<compile_context>
chip_gen: v7x
topology: tpu7x:2x2x1
jax: 0.10.0
libtpu: 0.0.40
codegen_flags: <defaults>
</compile_context>

<pallas_src>
import functools

import jax
import jax.numpy as jnp
from jax.experimental import pallas as pl
from jax.experimental.pallas import tpu as pltpu


def _round_up(x, m):
    return (x + m - 1) // m * m


def _mlp_kernel(x_ref, w1_ref, b1_ref, w2_ref, b2_ref, o_ref):
    # lin1 + ReLU. Cast the x tile to the weight dtype so bf16 weights hit the
    # bf16 MXU path on v6e/v7x (f32 weights keep everything in f32). f32 accum.
    x = x_ref[...].astype(w1_ref.dtype)
    h = jnp.dot(x, w1_ref[...], preferred_element_type=jnp.float32)
    h = jnp.maximum(h + b1_ref[...], 0.0)          # broadcast (1, Hp), f32

    # lin2 (cast ReLU output back to the weight dtype for the MXU).
    logits = jnp.dot(h.astype(w2_ref.dtype), w2_ref[...],
                     preferred_element_type=jnp.float32)
    logits = logits + b2_ref[...]                  # broadcast (1, Cp), f32

    # Numerically stable log_softmax over the class axis. Padded class lanes
    # carry a -1e30 bias, so exp() underflows to 0 and valid classes are exact.
    m = jnp.max(logits, axis=1, keepdims=True)
    shifted = logits - m
    lse = jnp.log(jnp.sum(jnp.exp(shifted), axis=1, keepdims=True))
    o_ref[...] = (shifted - lse).astype(o_ref.dtype)


def prepare_mlp_params(w1, b1, w2, b2, *, weight_dtype=jnp.float32, lane=128):
    """Pad/cast the weights ONCE at model init (hoisted out of the forward).

    w1: [F, H], b1: [H], w2: [H, C], b2: [C]  (note: [in, out] layout).
    Hidden/class dims are lane-padded to 128 so both matmul outputs and the
    final store are lane-dense; the feature dim is left un-padded.
    """
    f, h = w1.shape
    c = w2.shape[1]
    hp = _round_up(h, lane)
    cp = _round_up(c, lane)

    w1p = jnp.zeros((f, hp), weight_dtype).at[:, :h].set(w1.astype(weight_dtype))
    b1p = jnp.zeros((1, hp), jnp.float32).at[0, :h].set(b1.astype(jnp.float32))
    w2p = jnp.zeros((hp, cp), weight_dtype).at[:h, :c].set(w2.astype(weight_dtype))
    # Large negative bias on padded classes -> exp() ~ 0, doesn't pollute lse.
    b2p = jnp.full((1, cp), -1e30, jnp.float32).at[0, :c].set(b2.astype(jnp.float32))

    return {"w1": w1p, "b1": b1p, "w2": w2p, "b2": b2p,
            "num_features": f, "hidden": h, "num_classes": c}


def _select_row_tile(n, row_align, max_row_tile):
    """Largest tile <= max_row_tile while keeping >=2 grid steps when n allows
    (v7x has 2 TensorCores; on 1-TC v5e/v6e big tiles just amortize per-step
    overhead)."""
    n_al = _round_up(n, row_align)
    half = _round_up(pl.cdiv(n_al, 2), row_align)
    return max(row_align, min(max_row_tile, half))


def mlp_forward(x, params, *, max_row_tile=1024, pad_output=False):
    """Fused MLP forward. x: [N, F]; params from prepare_mlp_params()."""
    n, f = x.shape
    assert f == params["num_features"]
    w1p, b1p, w2p, b2p = params["w1"], params["b1"], params["w2"], params["b2"]
    hp = w1p.shape[1]
    cp = w2p.shape[1]
    c = params["num_classes"]

    x_itemsize = jnp.dtype(x.dtype).itemsize
    w_itemsize = jnp.dtype(w1p.dtype).itemsize
    # Sublane alignment is dtype-aware: 8 rows for f32, 16 for bf16, 32 for i8/fp8.
    row_align = max(8, 32 // x_itemsize)

    row_tile = _select_row_tile(n, row_align, max_row_tile)
    n_pad = _round_up(n, row_tile)

    # Only copy x when row padding is actually required; feature dim is never
    # padded (block last dim == full array dim is legal).
    xp = x if n_pad == n else jnp.zeros((n_pad, f), x.dtype).at[:n].set(x)

    grid = (n_pad // row_tile,)

    # VMEM budget: double-buffered x/out tiles, single-buffered resident
    # weights (pl.Buffered(1)), biases, in-kernel f32 temporaries + headroom.
    f32 = 4
    vmem_bytes = (
        2 * row_tile * f * x_itemsize            # x tiles (double-buffered)
        + 2 * row_tile * cp * f32                # out tiles (double-buffered)
        + (f * hp + hp * cp) * w_itemsize        # w1, w2 (single-buffered)
        + 2 * (hp + cp) * f32                    # biases
        + row_tile * (hp + 2 * cp) * f32         # h / logits temporaries
    )
    try:
        vmem_cap = int(pltpu.get_tpu_info().vmem_capacity_bytes)
    except Exception:
        vmem_cap = 64 << 20                      # conservative (v7x physical)
    vmem_limit = int(vmem_bytes * 1.5) + (8 << 20)
    vmem_limit = max(vmem_limit, 16 << 20)
    vmem_limit = min(vmem_limit, int(0.75 * vmem_cap))

    cost = pl.CostEstimate(
        flops=2 * n_pad * (f * hp + hp * cp),
        transcendentals=n_pad * (cp + 1),        # one exp/elem + one log/row
        bytes_accessed=(n_pad * f * x_itemsize
                        + (f * hp + hp * cp) * w_itemsize
                        + (hp + cp) * f32
                        + n_pad * cp * f32),
    )

    out = pl.pallas_call(
        _mlp_kernel,
        out_shape=jax.ShapeDtypeStruct((n_pad, cp), jnp.float32),
        grid_spec=pltpu.PrefetchScalarGridSpec(
            num_scalar_prefetch=0,
            grid=grid,
            in_specs=[
                pl.BlockSpec((row_tile, f), lambda i: (i, 0)),      # x row tile
                pl.BlockSpec((f, hp), lambda i: (0, 0),             # w1 resident
                             pipeline_mode=pl.Buffered(1)),
                pl.BlockSpec((1, hp), lambda i: (0, 0)),            # b1
                pl.BlockSpec((hp, cp), lambda i: (0, 0),            # w2 resident
                             pipeline_mode=pl.Buffered(1)),
                pl.BlockSpec((1, cp), lambda i: (0, 0)),            # b2
            ],
            out_specs=pl.BlockSpec((row_tile, cp), lambda i: (i, 0)),
        ),
        compiler_params=pltpu.CompilerParams(
            dimension_semantics=("parallel",),
            vmem_limit_bytes=vmem_limit,
        ),
        cost_estimate=cost,
    )(xp, w1p, b1p, w2p, b2p)

    if pad_output:
        return out           # (n_pad, cp); caller masks/ignores padding downstream
    return out[:n, :c]       # module-exact shape (extra slice/copy at large N)


def _reference(x, w1, b1, w2, b2):
    h = jnp.maximum(x @ w1 + b1, 0.0)
    logits = h @ w2 + b2
    return jax.nn.log_softmax(logits, axis=1)


if __name__ == "__main__":
    # Small synthetic graph-node dataset: 512 nodes, 16 features, hidden=32,
    # 8 classes. Row tile = 256 -> 2 grid steps (keeps both v7x TCs busy).
    N, F, H, C = 512, 16, 32, 8

    key = jax.random.PRNGKey(0)
    kx, kw1, kb1, kw2, kb2 = jax.random.split(key, 5)

    x = jax.random.normal(kx, (N, F), dtype=jnp.float32)

    # Deterministic init mimicking torch.nn.Linear (uniform +/- 1/sqrt(fan_in)),
    # stored as [in, out].
    lim1 = 1.0 / (F ** 0.5)
    w1 = jax.random.uniform(kw1, (F, H), minval=-lim1, maxval=lim1, dtype=jnp.float32)
    b1 = jax.random.uniform(kb1, (H,), minval=-lim1, maxval=lim1, dtype=jnp.float32)
    lim2 = 1.0 / (H ** 0.5)
    w2 = jax.random.uniform(kw2, (H, C), minval=-lim2, maxval=lim2, dtype=jnp.float32)
    b2 = jax.random.uniform(kb2, (C,), minval=-lim2, maxval=lim2, dtype=jnp.float32)

    ref = _reference(x, w1, b1, w2, b2)

    # f32 path: exact vs reference.
    params_f32 = prepare_mlp_params(w1, b1, w2, b2, weight_dtype=jnp.float32)
    out = jax.block_until_ready(mlp_forward(x, params_f32))
    assert out.shape == (N, C)
    assert jnp.allclose(out, ref, atol=1e-5, rtol=1e-5), "f32 mismatch vs reference"

    # bf16 weights + bf16 x tile: the v6e/v7x MXU fast path (also fine on v5e's
    # MXU); f32 accumulation and f32 log_softmax preserved, looser tolerance.
    params_bf16 = prepare_mlp_params(w1, b1, w2, b2, weight_dtype=jnp.bfloat16)
    out_bf16 = jax.block_until_ready(
        mlp_forward(x.astype(jnp.bfloat16), params_bf16))
    assert out_bf16.shape == (N, C)
    assert jnp.allclose(out_bf16, ref, atol=1e-1, rtol=1e-1), "bf16 mismatch vs reference"

    print("KERNEL_OK")
</pallas_src>

<mosaic_0001>
module attributes {stable_mosaic.version = 11 : i64} {
  func.func @_mlp_kernel(%arg0: i32, %arg1: memref<256x16xf32, #tpu.memory_space<vmem>>, %arg2: memref<16x128xf32, #tpu.memory_space<vmem>>, %arg3: memref<1x128xf32, #tpu.memory_space<vmem>>, %arg4: memref<128x128xf32, #tpu.memory_space<vmem>>, %arg5: memref<1x128xf32, #tpu.memory_space<vmem>>, %arg6: memref<256x128xf32, #tpu.memory_space<vmem>>) attributes {dimension_semantics = [#tpu.dimension_semantics<parallel>], iteration_bounds = array<i64: 2>, scalar_prefetch = 0 : i64, scratch_operands = 0 : i64, tpu.core_type = #tpu.core_type<tc>, window_params = [{transform_indices = @transform_0, window_bounds = array<i64: 256, 16>}, {pipeline_mode = #tpu.pipeline_mode<synchronous>, transform_indices = @transform_1, window_bounds = array<i64: 16, 128>}, {pipeline_mode = #tpu.pipeline_mode<synchronous>, transform_indices = @transform_2, window_bounds = array<i64: 1, 128>}, {pipeline_mode = #tpu.pipeline_mode<synchronous>, transform_indices = @transform_3, window_bounds = array<i64: 128, 128>}, {pipeline_mode = #tpu.pipeline_mode<synchronous>, transform_indices = @transform_4, window_bounds = array<i64: 1, 128>}, {transform_indices = @transform_5, window_bounds = array<i64: 256, 128>}]} {
    %c0 = arith.constant 0 : index
    %c0_0 = arith.constant 0 : index
    %0 = vector.load %arg1[%c0, %c0_0] : memref<256x16xf32, #tpu.memory_space<vmem>>, vector<256x16xf32>
    %c0_1 = arith.constant 0 : index
    %c0_2 = arith.constant 0 : index
    %1 = vector.load %arg2[%c0_1, %c0_2] : memref<16x128xf32, #tpu.memory_space<vmem>>, vector<16x128xf32>
    %cst = arith.constant dense<0.000000e+00> : vector<256x128xf32>
    %2 = tpu.matmul %0, %1, %cst {dimension_numbers = #tpu.dot_dimension_numbers<[1], [0], [0], [1], [0, 0, 1, 1], [], []>} : vector<256x16xf32>, vector<16x128xf32>, vector<256x128xf32> -> vector<256x128xf32>
    %c0_3 = arith.constant 0 : index
    %c0_4 = arith.constant 0 : index
    %3 = vector.load %arg3[%c0_3, %c0_4] : memref<1x128xf32, #tpu.memory_space<vmem>>, vector<1x128xf32>
    %4 = vector.broadcast %3 : vector<1x128xf32> to vector<256x128xf32>
    %5 = arith.addf %2, %4 : vector<256x128xf32>
    %cst_5 = arith.constant 0.000000e+00 : f32
    %6 = vector.broadcast %cst_5 : f32 to vector<256x128xf32>
    %7 = arith.maximumf %5, %6 : vector<256x128xf32>
    %c0_6 = arith.constant 0 : index
    %c0_7 = arith.constant 0 : index
    %8 = vector.load %arg4[%c0_6, %c0_7] : memref<128x128xf32, #tpu.memory_space<vmem>>, vector<128x128xf32>
    %cst_8 = arith.constant dense<0.000000e+00> : vector<256x128xf32>
    %9 = tpu.matmul %7, %8, %cst_8 {dimension_numbers = #tpu.dot_dimension_numbers<[1], [0], [0], [1], [0, 0, 1, 1], [], []>} : vector<256x128xf32>, vector<128x128xf32>, vector<256x128xf32> -> vector<256x128xf32>
    %c0_9 = arith.constant 0 : index
    %c0_10 = arith.constant 0 : index
    %10 = vector.load %arg5[%c0_9, %c0_10] : memref<1x128xf32, #tpu.memory_space<vmem>>, vector<1x128xf32>
    %11 = vector.broadcast %10 : vector<1x128xf32> to vector<256x128xf32>
    %12 = arith.addf %9, %11 : vector<256x128xf32>
    %cst_11 = arith.constant dense<0xFF800000> : vector<256xf32>
    %13 = vector.multi_reduction <maximumf>, %12, %cst_11 [1] : vector<256x128xf32> to vector<256xf32>
    %14 = vector.shape_cast %13 : vector<256xf32> to vector<256x1xf32>
    %15 = vector.broadcast %14 : vector<256x1xf32> to vector<256x128xf32>
    %16 = arith.subf %12, %15 : vector<256x128xf32>
    %17 = math.exp %16 : vector<256x128xf32>
    %cst_12 = arith.constant dense<0.000000e+00> : vector<256xf32>
    %18 = vector.multi_reduction <add>, %17, %cst_12 [1] : vector<256x128xf32> to vector<256xf32>
    %19 = vector.shape_cast %18 : vector<256xf32> to vector<256x1xf32>
    %20 = math.log %19 : vector<256x1xf32>
    %21 = vector.broadcast %20 : vector<256x1xf32> to vector<256x128xf32>
    %22 = arith.subf %16, %21 : vector<256x128xf32>
    %c0_13 = arith.constant 0 : index
    %c0_14 = arith.constant 0 : index
    %23 = vector.load %arg6[%c0_13, %c0_14] : memref<256x128xf32, #tpu.memory_space<vmem>>, vector<256x128xf32>
    tpu.vector_store %arg6[%c0_13, %c0_14], %22 {strides = array<i32>} : memref<256x128xf32, #tpu.memory_space<vmem>>, vector<256x128xf32>,
    return
  }
  func.func @transform_0(%arg0: i32) -> (i32, i32) {
    %c0_i32 = arith.constant 0 : i32
    %c0_i32_0 = arith.constant 0 : i32
    return %arg0, %c0_i32 : i32, i32
  }
  func.func @transform_1(%arg0: i32) -> (i32, i32) {
    %c0_i32 = arith.constant 0 : i32
    %c0_i32_0 = arith.constant 0 : i32
    %c0_i32_1 = arith.constant 0 : i32
    return %c0_i32, %c0_i32_0 : i32, i32
  }
  func.func @transform_2(%arg0: i32) -> (i32, i32) {
    %c0_i32 = arith.constant 0 : i32
    %c0_i32_0 = arith.constant 0 : i32
    %c0_i32_1 = arith.constant 0 : i32
    return %c0_i32, %c0_i32_0 : i32, i32
  }
  func.func @transform_3(%arg0: i32) -> (i32, i32) {
    %c0_i32 = arith.constant 0 : i32
    %c0_i32_0 = arith.constant 0 : i32
    %c0_i32_1 = arith.constant 0 : i32
    return %c0_i32, %c0_i32_0 : i32, i32
  }
  func.func @transform_4(%arg0: i32) -> (i32, i32) {
    %c0_i32 = arith.constant 0 : i32
    %c0_i32_0 = arith.constant 0 : i32
    %c0_i32_1 = arith.constant 0 : i32
    return %c0_i32, %c0_i32_0 : i32, i32
  }
  func.func @transform_5(%arg0: i32) -> (i32, i32) {
    %c0_i32 = arith.constant 0 : i32
    %c0_i32_0 = arith.constant 0 : i32
    return %arg0, %c0_i32 : i32, i32
  }
}

</mosaic_0001>

<llo_original>
// kernel: tpu_custom_call.1
$region0: #{tpu_custom_call.1}
  #allocation0 [shape = 'u32[]', space=smem, size = 0x4, offset = 0x4, fixed_abs, tag = 'smem constant byte address 0x4 - core index']
  #allocation1 [shape = 'u32[144,128]{1,0:T(1,128)}', space=vmem, size = 0x12000, scoped, tag = 'internal scratch']
  %s0 = inlined_call_operand.vmem [shape: f32[512,16], index: 0, kind: input, shape index: {}]
  %s1 = inlined_call_operand.vmem [shape: f32[16,128], index: 1, kind: input, shape index: {}]
  %s2 = inlined_call_operand.vmem [shape: f32[1,128], index: 2, kind: input, shape index: {}]
  %s3 = inlined_call_operand.vmem [shape: f32[128,128], index: 3, kind: input, shape index: {}]
  %s4 = inlined_call_operand.vmem [shape: f32[1,128], index: 4, kind: input, shape index: {}]
  %s5 = inlined_call_operand.hbm [shape: f32[512,128], index: 5, kind: output, shape index: {}]
  %s6 = sld [smem:[#allocation0]]
  $region53: #{tpu_custom_call.1} parent=0
    _
  %s8 = ssub.s32 1, %s6
  %s9 = scalar_select 0, %s8, %s6
  $region1: #{tpu_custom_call.1} parent=0
    #allocation2 [shape = 'u8[262144]{0}', space=vmem, size = 0x40000, scoped, tag = 'output window, operand 0']
    #allocation3 [shape = 's32[2]{0}', space=sflag, size = 0x8, scoped, tag = 'scoped memory for tpu_custom_call.1']
    %10 = vsyncpa [#allocation3], 0
    %s11 = scalar_lea.sflag [#allocation3], 1
    %12 = vsyncpa %s11, 0
    loop: start=0, step=1, limit=4
    $region2: #{tpu_custom_call.1} parent=1 // loop_pre_header
      _
    $region3: #{tpu_custom_call.1} parent=1 // loop_header
      %s14 = sphi 0, %s18
      %p15 = scmp.ge.s32.totalorder %s14, 4
      %s24 = sphi 0, %s26
      %s27 = sphi 0, %s24
      %s28 = sphi 0, %s27
      %s44 = sphi 0, %s28
      %s48 = sphi 0, %s48
      %s50 = sphi 0, %s48
      %s51 = sphi 0, %s50
      %s65 = sphi 0, %s51
      %s69 = sphi 0, %s69
      %s71 = sphi 0, %s69
      %s72 = sphi 0, %s71
      %s86 = sphi 0, %s72
      %s90 = sphi 0, %s90
      %s92 = sphi 0, %s90
      %s93 = sphi 0, %s92
      %s107 = sphi 0, %s93
      %s111 = sphi 0, %s111
      %s113 = sphi 0, %s111
      %s114 = sphi 0, %s113
      %s128 = sphi 0, %s114
      %s134 = sphi 0, %s136
      %s137 = sphi 0, %s134
      %s138 = sphi 0, %s137
      %s154 = sphi 0, %s138
    $region4: #{tpu_custom_call.1} parent=1 // loop_header_branch
      %17 = sbr.rel (%p15) target = $region8
    $region5: #{tpu_custom_call.1} parent=1 // loop_body
      %s19 = ssub.s32 %s14, 1
      %s20 = ssub.s32 %s14, 2
      %s21 = sadd.s32 %s14, 1
      %s22 = ssub.s32 %s14, %s21
      %p23 = scmp.eq.s32.totalorder %s22, 0
      %s25 = sadd.s32 %s24, 1
      %s26 = scalar_select %p23, %s24, %s25
      %p29 = pneg %p23
      %p30 = scmp.eq.s32.totalorder %s14, 1
      %p31 = por %p29, %p30
      %p32 = scmp.ne.s32.totalorder %s24, %s27
      %p33 = scmp.eq.s32.totalorder %s14, 0
      %p34 = por %p32, %p33
      %p35 = scmp.ne.s32.totalorder %s24, %s27
      %p36 = scmp.eq.s32.totalorder %s19, 1
      %p37 = por %p35, %p36
      %p38 = scmp.ne.s32.totalorder %s27, %s28
      %p39 = scmp.eq.s32.totalorder %s19, 0
      %p40 = por %p38, %p39
      %p41 = scmp.ne.s32.totalorder %s27, %s28
      %p42 = scmp.eq.s32.totalorder %s20, 1
      %p43 = por %p41, %p42
      %p45 = scmp.ne.s32.totalorder %s28, %s44
      %p46 = scmp.eq.s32.totalorder %s20, 0
      %p47 = por %p45, %p46
      %s49 = sadd.s32 %s48, 1
      %p52 = scmp.eq.s32.totalorder %s14, 1
      %p53 = scmp.ne.s32.totalorder %s48, %s50
      %p54 = scmp.eq.s32.totalorder %s14, 0
      %p55 = por %p53, %p54
      %p56 = scmp.ne.s32.totalorder %s48, %s50
      %p57 = scmp.eq.s32.totalorder %s19, 1
      %p58 = por %p56, %p57
      %p59 = scmp.ne.s32.totalorder %s50, %s51
      %p60 = scmp.eq.s32.totalorder %s19, 0
      %p61 = por %p59, %p60
      %p62 = scmp.ne.s32.totalorder %s50, %s51
      %p63 = scmp.eq.s32.totalorder %s20, 1
      %p64 = por %p62, %p63
      %p66 = scmp.ne.s32.totalorder %s51, %s65
      %p67 = scmp.eq.s32.totalorder %s20, 0
      %p68 = por %p66, %p67
      %s70 = sadd.s32 %s69, 1
      %p73 = scmp.eq.s32.totalorder %s14, 1
      %p74 = scmp.ne.s32.totalorder %s69, %s71
      %p75 = scmp.eq.s32.totalorder %s14, 0
      %p76 = por %p74, %p75
      %p77 = scmp.ne.s32.totalorder %s69, %s71
      %p78 = scmp.eq.s32.totalorder %s19, 1
      %p79 = por %p77, %p78
      %p80 = scmp.ne.s32.totalorder %s71, %s72
      %p81 = scmp.eq.s32.totalorder %s19, 0
      %p82 = por %p80, %p81
      %p83 = scmp.ne.s32.totalorder %s71, %s72
      %p84 = scmp.eq.s32.totalorder %s20, 1
      %p85 = por %p83, %p84
      %p87 = scmp.ne.s32.totalorder %s72, %s86
      %p88 = scmp.eq.s32.totalorder %s20, 0
      %p89 = por %p87, %p88
      %s91 = sadd.s32 %s90, 1
      %p94 = scmp.eq.s32.totalorder %s14, 1
      %p95 = scmp.ne.s32.totalorder %s90, %s92
      %p96 = scmp.eq.s32.totalorder %s14, 0
      %p97 = por %p95, %p96
      %p98 = scmp.ne.s32.totalorder %s90, %s92
      %p99 = scmp.eq.s32.totalorder %s19, 1
      %p100 = por %p98, %p99
      %p101 = scmp.ne.s32.totalorder %s92, %s93
      %p102 = scmp.eq.s32.totalorder %s19, 0
      %p103 = por %p101, %p102
      %p104 = scmp.ne.s32.totalorder %s92, %s93
      %p105 = scmp.eq.s32.totalorder %s20, 1
      %p106 = por %p104, %p105
      %p108 = scmp.ne.s32.totalorder %s93, %s107
      %p109 = scmp.eq.s32.totalorder %s20, 0
      %p110 = por %p108, %p109
      %s112 = sadd.s32 %s111, 1
      %p115 = scmp.eq.s32.totalorder %s14, 1
      %p116 = scmp.ne.s32.totalorder %s111, %s113
      %p117 = scmp.eq.s32.totalorder %s14, 0
      %p118 = por %p116, %p117
      %p119 = scmp.ne.s32.totalorder %s111, %s113
      %p120 = scmp.eq.s32.totalorder %s19, 1
      %p121 = por %p119, %p120
      %p122 = scmp.ne.s32.totalorder %s113, %s114
      %p123 = scmp.eq.s32.totalorder %s19, 0
      %p124 = por %p122, %p123
      %p125 = scmp.ne.s32.totalorder %s113, %s114
      %p126 = scmp.eq.s32.totalorder %s20, 1
      %p127 = por %p125, %p126
      %p129 = scmp.ne.s32.totalorder %s114, %s128
      %p130 = scmp.eq.s32.totalorder %s20, 0
      %p131 = por %p129, %p130
      %s132 = ssub.s32 %s14, %s21
      %p133 = scmp.eq.s32.totalorder %s132, 0
      %s135 = sadd.s32 %s134, 1
      %s136 = scalar_select %p133, %s134, %s135
      %p139 = pneg %p133
      %p140 = scmp.eq.s32.totalorder %s14, 1
      %p141 = por %p139, %p140
      %p142 = scmp.ne.s32.totalorder %s134, %s137
      %p143 = scmp.eq.s32.totalorder %s14, 0
      %p144 = por %p142, %p143
      %p145 = scmp.ne.s32.totalorder %s134, %s137
      %p146 = scmp.eq.s32.totalorder %s19, 1
      %p147 = por %p145, %p146
      %p148 = scmp.ne.s32.totalorder %s137, %s138
      %p149 = scmp.eq.s32.totalorder %s19, 0
      %p150 = por %p148, %p149
      %p151 = scmp.ne.s32.totalorder %s137, %s138
      %p152 = scmp.eq.s32.totalorder %s20, 1
      %p153 = por %p151, %p152
      %p155 = scmp.ne.s32.totalorder %s138, %s154
      %p156 = scmp.eq.s32.totalorder %s20, 0
      %p157 = por %p155, %p156
      %p158 = scmp.le.s32.totalorder 1, %s14
      %p159 = scmp.lt.s32.totalorder %s14, 3
      %p160 = pnand %p158, %p159
      %p161 = pneg %p160
      // Predicated region
      $region9: #{tpu_custom_call.1} parent=5 // pred_check
        _
      $region10: #{tpu_custom_call.1} parent=5 // pred_check_branch
        %163 = sbr.rel (%p160) target = $region12
      $region11: #{tpu_custom_call.1} parent=5 // pred_region
        %s164 = ssub.s32 %s14, 1
        // Predicated region
        $region13: #{tpu_custom_call.1} parent=11 // pred_check
          %p165 = pneg %p61
        $region14: #{tpu_custom_call.1} parent=11 // pred_check_branch
          %167 = sbr.rel (%p165) target = $region16
        $region15: #{tpu_custom_call.1} parent=11 // pred_region
          _
        $region16: #{tpu_custom_call.1} parent=11 // pred_fallthru
          _
        // Predicated region
        $region17: #{tpu_custom_call.1} parent=11 // pred_check
          %p168 = pneg %p82
        $region18: #{tpu_custom_call.1} parent=11 // pred_check_branch
          %170 = sbr.rel (%p168) target = $region20
        $region19: #{tpu_custom_call.1} parent=11 // pred_region
          _
        $region20: #{tpu_custom_call.1} parent=11 // pred_fallthru
          _
        // Predicated region
        $region21: #{tpu_custom_call.1} parent=11 // pred_check
          %p171 = pneg %p103
        $region22: #{tpu_custom_call.1} parent=11 // pred_check_branch
          %173 = sbr.rel (%p171) target = $region24
        $region23: #{tpu_custom_call.1} parent=11 // pred_region
          _
        $region24: #{tpu_custom_call.1} parent=11 // pred_fallthru
          _
        // Predicated region
        $region25: #{tpu_custom_call.1} parent=11 // pred_check
          %p174 = pneg %p124
        $region26: #{tpu_custom_call.1} parent=11 // pred_check_branch
          %176 = sbr.rel (%p174) target = $region28
        $region27: #{tpu_custom_call.1} parent=11 // pred_region
          _
        $region28: #{tpu_custom_call.1} parent=11 // pred_fallthru
          _
      $region12: #{tpu_custom_call.1} parent=5 // pred_fallthru
        _
      %p177 = scmp.lt.s32.totalorder %s14, 2
      // Predicated region
      $region29: #{tpu_custom_call.1} parent=5 // pred_check
        %p178 = pneg %p177
      $region30: #{tpu_custom_call.1} parent=5 // pred_check_branch
        %180 = sbr.rel (%p178) target = $region32
      $region31: #{tpu_custom_call.1} parent=5 // pred_region
        // Predicated region
        $region33: #{tpu_custom_call.1} parent=31 // pred_check
          %p181 = pneg %p34
        $region34: #{tpu_custom_call.1} parent=31 // pred_check_branch
          %183 = sbr.rel (%p181) target = $region36
        $region35: #{tpu_custom_call.1} parent=31 // pred_region
          %s184 = smul.u32 32, %s14
          %p185 = scmp.lt.s32.totalorder %s184, 63
          %s186 = scalar_select %p185, %s184, 63
          %s187 = smul.addr %s186, 8
          %s188 = scalar_lea.vmem %s0, %s187
          %s189 = smul.u32 32, %s14
        $region36: #{tpu_custom_call.1} parent=31 // pred_fallthru
          _
      $region32: #{tpu_custom_call.1} parent=5 // pred_fallthru
        _
      %p190 = scmp.le.s32.totalorder 1, %s14
      %p191 = scmp.lt.s32.totalorder %s14, 3
      %p192 = pnand %p190, %p191
      %p193 = pneg %p192
      // Predicated region
      $region37: #{tpu_custom_call.1} parent=5 // pred_check
        _
      $region38: #{tpu_custom_call.1} parent=5 // pred_check_branch
        %195 = sbr.rel (%p192) target = $region40
      $region39: #{tpu_custom_call.1} parent=5 // pred_region
        %s196 = ssub.s32 %s14, 1
        %s197 = smul.u32 32, %s19
        %p198 = scmp.lt.s32.totalorder %s197, 63
        %s199 = scalar_select %p198, %s197, 63
        %s200 = smul.addr %s199, 8
        %s201 = scalar_lea.vmem %s0, %s200
        %p202 = pneg %p40
        %p203 = pneg %p37
        %p204 = pneg %p61
        %p205 = pneg %p58
        %p206 = pneg %p82
        %p207 = pneg %p79
        %p208 = pneg %p103
        %p209 = pneg %p100
        %p210 = pneg %p124
        %p211 = pneg %p121
        %p212 = pneg %p150
        %p213 = pneg %p147
        %s214 = sand.u32 %s137, 1
        %s215 = scalar_lea.sflag [#allocation3], %s214
        %s216 = sand.u32 %s137, 1
        %s217 = smul.addr %s216, 256
        %s218 = scalar_lea.vmem [#allocation2], %s217
        %s219 = smul.u32 32, %s19
        %p220 = scmp.lt.s32.totalorder %s219, 63
        %s221 = scalar_select %p220, %s219, 63
        %s222 = smul.addr %s221, 8
        %s223 = scalar_lea.vmem %s0, %s222
        %s224 = smul.u32 32, %s19
        %s225 = smul.u32 32, %s19
        %v226 = vld [vmem:[%s223] sm:$0xff]
        %v227 = vld [vmem:[%s223 + $0x8] sm:$0xff]
        %v228 = vld [vmem:[%s223 + $0x10] sm:$0xff]
        %v229 = vld [vmem:[%s223 + $0x18] sm:$0xff]
        %v230 = vld [vmem:[%s223 + $0x20] sm:$0xff]
        %v231 = vld [vmem:[%s223 + $0x28] sm:$0xff]
        %v232 = vld [vmem:[%s223 + $0x30] sm:$0xff]
        %v233 = vld [vmem:[%s223 + $0x38] sm:$0xff]
        %v234 = vld [vmem:[%s223 + $0x40] sm:$0xff]
        %v235 = vld [vmem:[%s223 + $0x48] sm:$0xff]
        %v236 = vld [vmem:[%s223 + $0x50] sm:$0xff]
        %v237 = vld [vmem:[%s223 + $0x58] sm:$0xff]
        %v238 = vld [vmem:[%s223 + $0x60] sm:$0xff]
        %v239 = vld [vmem:[%s223 + $0x68] sm:$0xff]
        %v240 = vld [vmem:[%s223 + $0x70] sm:$0xff]
        %v241 = vld [vmem:[%s223 + $0x78] sm:$0xff]
        %v242 = vld [vmem:[%s223 + $0x80] sm:$0xff]
        %v243 = vld [vmem:[%s223 + $0x88] sm:$0xff]
        %v244 = vld [vmem:[%s223 + $0x90] sm:$0xff]
        %v245 = vld [vmem:[%s223 + $0x98] sm:$0xff]
        %v246 = vld [vmem:[%s223 + $0xa0] sm:$0xff]
        %v247 = vld [vmem:[%s223 + $0xa8] sm:$0xff]
        %v248 = vld [vmem:[%s223 + $0xb0] sm:$0xff]
        %v249 = vld [vmem:[%s223 + $0xb8] sm:$0xff]
        %v250 = vld [vmem:[%s223 + $0xc0] sm:$0xff]
        %v251 = vld [vmem:[%s223 + $0xc8] sm:$0xff]
        %v252 = vld [vmem:[%s223 + $0xd0] sm:$0xff]
        %v253 = vld [vmem:[%s223 + $0xd8] sm:$0xff]
        %v254 = vld [vmem:[%s223 + $0xe0] sm:$0xff]
        %v255 = vld [vmem:[%s223 + $0xe8] sm:$0xff]
        %v256 = vld [vmem:[%s223 + $0xf0] sm:$0xff]
        %v257 = vld [vmem:[%s223 + $0xf8] sm:$0xff]
        %v258 = vld [vmem:[%s1] sm:$0xff]
        %v259 = vld [vmem:[%s1 + $0x8] sm:$0xff]
        %v260 = vld [vmem:[%s2] sm:$0x1]
        %v262 = vlaneseq
        %v263 = vshrl.u32 %v262, 7
        %v264 = vsub.s32 0, %v263
        %v265 = vrot.slane %v260, %v264
        %vm267 = vcmask 130048
        %v269 = vsel %vm267, %v226, 0
        %v272 = vsel %vm267, %v227, 0
        %v275 = vsel %vm267, %v228, 0
        %v278 = vsel %vm267, %v229, 0
        %v281 = vsel %vm267, %v230, 0
        %v284 = vsel %vm267, %v231, 0
        %v287 = vsel %vm267, %v232, 0
        %v290 = vsel %vm267, %v233, 0
        %v293 = vsel %vm267, %v234, 0
        %v296 = vsel %vm267, %v235, 0
        %v299 = vsel %vm267, %v236, 0
        %v302 = vsel %vm267, %v237, 0
        %v305 = vsel %vm267, %v238, 0
        %v308 = vsel %vm267, %v239, 0
        %v311 = vsel %vm267, %v240, 0
        %v314 = vsel %vm267, %v241, 0
        %v317 = vsel %vm267, %v242, 0
        %v320 = vsel %vm267, %v243, 0
        %v323 = vsel %vm267, %v244, 0
        %v326 = vsel %vm267, %v245, 0
        %v329 = vsel %vm267, %v246, 0
        %v332 = vsel %vm267, %v247, 0
        %v335 = vsel %vm267, %v248, 0
        %v338 = vsel %vm267, %v249, 0
        %v341 = vsel %vm267, %v250, 0
        %v344 = vsel %vm267, %v251, 0
        %v347 = vsel %vm267, %v252, 0
        %v350 = vsel %vm267, %v253, 0
        %v353 = vsel %vm267, %v254, 0
        %v356 = vsel %vm267, %v255, 0
        %v359 = vsel %vm267, %v256, 0
        %v362 = vsel %vm267, %v257, 0
        %364 = vmatprep.subr.mxu0 0.0
        %365 = vmatpush1.msra.mxu0 %v258
        %366 = vmatprep.subr.mxu0 0.0
        %367 = vmatpush1.msra.mxu0 %v259
        %368 = vmatprep.subr.mxu0 0.0
        %369 = vmatpush1.msra.mxu0 0.0
        %370 = vmatprep.subr.mxu0 0.0
        %371 = vmatpush1.msra.mxu0 0.0
        %372 = vmatprep.subr.mxu0 0.0
        %373 = vmatpush1.msra.mxu0 0.0
        %374 = vmatprep.subr.mxu0 0.0
        %375 = vmatpush1.msra.mxu0 0.0
        %376 = vmatprep.subr.mxu0 0.0
        %377 = vmatpush1.msra.mxu0 0.0
        %378 = vmatprep.subr.mxu0 0.0
        %379 = vmatpush1.msra.mxu0 0.0
        %380 = vmatprep.subr.mxu0 0.0
        %381 = vmatpush1.msra.mxu0 0.0
        %382 = vmatprep.subr.mxu0 0.0
        %383 = vmatpush1.msra.mxu0 0.0
        %384 = vmatprep.subr.mxu0 0.0
        %385 = vmatpush1.msra.mxu0 0.0
        %386 = vmatprep.subr.mxu0 0.0
        %387 = vmatpush1.msra.mxu0 0.0
        %388 = vmatprep.subr.mxu0 0.0
        %389 = vmatpush1.msra.mxu0 0.0
        %390 = vmatprep.subr.mxu0 0.0
        %391 = vmatpush1.msra.mxu0 0.0
        %392 = vmatprep.subr.mxu0 0.0
        %393 = vmatpush1.msra.mxu0 0.0
        %394 = vmatprep.subr.mxu0 0.0
        %395 = vmatpush1.msra.mxu0 0.0
        %396 = vmatprep.subr.mxu0 0.0
        %397 = vmatpush1.msra.mxu0 0.0
        %398 = vmatprep.subr.mxu0 0.0
        %399 = vmatpush1.msra.mxu0 0.0
        %400 = vmatprep.subr.mxu0 0.0
        %401 = vmatpush1.msra.mxu0 0.0
        %402 = vmatprep.subr.mxu0 0.0
        %403 = vmatpush1.msra.mxu0 0.0
        %404 = vmatprep.subr.mxu0 0.0
        %405 = vmatpush1.msra.mxu0 0.0
        %406 = vmatprep.subr.mxu0 0.0
        %407 = vmatpush1.msra.mxu0 0.0
        %408 = vmatprep.subr.mxu0 0.0
        %409 = vmatpush1.msra.mxu0 0.0
        %410 = vmatprep.subr.mxu0 0.0
        %411 = vmatpush1.msra.mxu0 0.0
        %412 = vmatprep.subr.mxu0 0.0
        %413 = vmatpush1.msra.mxu0 0.0
        %414 = vmatprep.subr.mxu0 0.0
        %415 = vmatpush1.msra.mxu0 0.0
        %416 = vmatprep.subr.mxu0 0.0
        %417 = vmatpush1.msra.mxu0 0.0
        %418 = vmatprep.subr.mxu0 0.0
        %419 = vmatpush1.msra.mxu0 0.0
        %420 = vmatprep.subr.mxu0 0.0
        %421 = vmatpush1.msra.mxu0 0.0
        %422 = vmatprep.subr.mxu0 0.0
        %423 = vmatpush1.msra.mxu0 0.0
        %424 = vmatprep.subr.mxu0 0.0
        %425 = vmatpush1.msra.mxu0 0.0
        %426 = vmatprep.subr.mxu0 0.0
        %427 = vmatpush1.msra.mxu0 0.0
        %428 = vmatprep.mubr.f32.mxu0 0.0
        %429 = vmatmul.mubr.f32.gmra.mrb[0].mxu0 %v269
        %v430 = vpop.f32.mrb[0].mxu0
        %v431 = vadd.f32 %v265, %v430
        %v432 = vpop.f32.mrb[0].mxu0
        %433 = vmatprep.mubr.f32.mxu0 0.0
        %434 = vmatmul.mubr.f32.gmra.mrb[0].mxu0 %v272
        %v435 = vpop.f32.mrb[0].mxu0
        %v436 = vadd.f32 %v265, %v435
        %v437 = vpop.f32.mrb[0].mxu0
        %438 = vmatprep.mubr.f32.mxu0 0.0
        %439 = vmatmul.mubr.f32.gmra.mrb[0].mxu0 %v275
        %v440 = vpop.f32.mrb[0].mxu0
        %v441 = vadd.f32 %v265, %v440
        %v442 = vpop.f32.mrb[0].mxu0
        %443 = vmatprep.mubr.f32.mxu0 0.0
        %444 = vmatmul.mubr.f32.gmra.mrb[0].mxu0 %v278
        %v445 = vpop.f32.mrb[0].mxu0
        %v446 = vadd.f32 %v265, %v445
        %v447 = vpop.f32.mrb[0].mxu0
        %448 = vmatprep.mubr.f32.mxu0 0.0
        %449 = vmatmul.mubr.f32.gmra.mrb[0].mxu0 %v281
        %v450 = vpop.f32.mrb[0].mxu0
        %v451 = vadd.f32 %v265, %v450
        %v452 = vpop.f32.mrb[0].mxu0
        %453 = vmatprep.mubr.f32.mxu0 0.0
        %454 = vmatmul.mubr.f32.gmra.mrb[0].mxu0 %v284
        %v455 = vpop.f32.mrb[0].mxu0
        %v456 = vadd.f32 %v265, %v455
        %v457 = vpop.f32.mrb[0].mxu0
        %458 = vmatprep.mubr.f32.mxu0 0.0
        %459 = vmatmul.mubr.f32.gmra.mrb[0].mxu0 %v287
        %v460 = vpop.f32.mrb[0].mxu0
        %v461 = vadd.f32 %v265, %v460
        %v462 = vpop.f32.mrb[0].mxu0
        %463 = vmatprep.mubr.f32.mxu0 0.0
        %464 = vmatmul.mubr.f32.gmra.mrb[0].mxu0 %v290
        %v465 = vpop.f32.mrb[0].mxu0
        %v466 = vadd.f32 %v265, %v465
        %v467 = vpop.f32.mrb[0].mxu0
        %468 = vmatprep.mubr.f32.mxu0 0.0
        %469 = vmatmul.mubr.f32.gmra.mrb[0].mxu0 %v293
        %v470 = vpop.f32.mrb[0].mxu0
        %v471 = vadd.f32 %v265, %v470
        %v472 = vpop.f32.mrb[0].mxu0
        %473 = vmatprep.mubr.f32.mxu0 0.0
        %474 = vmatmul.mubr.f32.gmra.mrb[0].mxu0 %v296
        %v475 = vpop.f32.mrb[0].mxu0
        %v476 = vadd.f32 %v265, %v475
        %v477 = vpop.f32.mrb[0].mxu0
        %478 = vmatprep.mubr.f32.mxu0 0.0
        %479 = vmatmul.mubr.f32.gmra.mrb[0].mxu0 %v299
        %v480 = vpop.f32.mrb[0].mxu0
        %v481 = vadd.f32 %v265, %v480
        %v482 = vpop.f32.mrb[0].mxu0
        %483 = vmatprep.mubr.f32.mxu0 0.0
        %484 = vmatmul.mubr.f32.gmra.mrb[0].mxu0 %v302
        %v485 = vpop.f32.mrb[0].mxu0
        %v486 = vadd.f32 %v265, %v485
        %v487 = vpop.f32.mrb[0].mxu0
        %488 = vmatprep.mubr.f32.mxu0 0.0
        %489 = vmatmul.mubr.f32.gmra.mrb[0].mxu0 %v305
        %v490 = vpop.f32.mrb[0].mxu0
        %v491 = vadd.f32 %v265, %v490
        %v492 = vpop.f32.mrb[0].mxu0
        %493 = vmatprep.mubr.f32.mxu0 0.0
        %494 = vmatmul.mubr.f32.gmra.mrb[0].mxu0 %v308
        %v495 = vpop.f32.mrb[0].mxu0
        %v496 = vadd.f32 %v265, %v495
        %v497 = vpop.f32.mrb[0].mxu0
        %498 = vmatprep.mubr.f32.mxu0 0.0
        %499 = vmatmul.mubr.f32.gmra.mrb[0].mxu0 %v311
        %v500 = vpop.f32.mrb[0].mxu0
        %v501 = vadd.f32 %v265, %v500
        %v502 = vpop.f32.mrb[0].mxu0
        %503 = vmatprep.mubr.f32.mxu0 0.0
        %504 = vmatmul.mubr.f32.gmra.mrb[0].mxu0 %v314
        %v505 = vpop.f32.mrb[0].mxu0
        %v506 = vadd.f32 %v265, %v505
        %v507 = vpop.f32.mrb[0].mxu0
        %508 = vmatprep.mubr.f32.mxu0 0.0
        %509 = vmatmul.mubr.f32.gmra.mrb[0].mxu0 %v317
        %v510 = vpop.f32.mrb[0].mxu0
        %v511 = vadd.f32 %v265, %v510
        %v512 = vpop.f32.mrb[0].mxu0
        %513 = vmatprep.mubr.f32.mxu0 0.0
        %514 = vmatmul.mubr.f32.gmra.mrb[0].mxu0 %v320
        %v515 = vpop.f32.mrb[0].mxu0
        %v516 = vadd.f32 %v265, %v515
        %v517 = vpop.f32.mrb[0].mxu0
        %518 = vmatprep.mubr.f32.mxu0 0.0
        %519 = vmatmul.mubr.f32.gmra.mrb[0].mxu0 %v323
        %v520 = vpop.f32.mrb[0].mxu0
        %v521 = vadd.f32 %v265, %v520
        %v522 = vpop.f32.mrb[0].mxu0
        %523 = vmatprep.mubr.f32.mxu0 0.0
        %524 = vmatmul.mubr.f32.gmra.mrb[0].mxu0 %v326
        %v525 = vpop.f32.mrb[0].mxu0
        %v526 = vadd.f32 %v265, %v525
        %v527 = vpop.f32.mrb[0].mxu0
        %528 = vmatprep.mubr.f32.mxu0 0.0
        %529 = vmatmul.mubr.f32.gmra.mrb[0].mxu0 %v329
        %v530 = vpop.f32.mrb[0].mxu0
        %v531 = vadd.f32 %v265, %v530
        %v532 = vpop.f32.mrb[0].mxu0
        %533 = vmatprep.mubr.f32.mxu0 0.0
        %534 = vmatmul.mubr.f32.gmra.mrb[0].mxu0 %v332
        %v535 = vpop.f32.mrb[0].mxu0
        %v536 = vadd.f32 %v265, %v535
        %v537 = vpop.f32.mrb[0].mxu0
        %538 = vmatprep.mubr.f32.mxu0 0.0
        %539 = vmatmul.mubr.f32.gmra.mrb[0].mxu0 %v335
        %v540 = vpop.f32.mrb[0].mxu0
        %v541 = vadd.f32 %v265, %v540
        %v542 = vpop.f32.mrb[0].mxu0
        %543 = vmatprep.mubr.f32.mxu0 0.0
        %544 = vmatmul.mubr.f32.gmra.mrb[0].mxu0 %v338
        %v545 = vpop.f32.mrb[0].mxu0
        %v546 = vadd.f32 %v265, %v545
        %v547 = vpop.f32.mrb[0].mxu0
        %548 = vmatprep.mubr.f32.mxu0 0.0
        %549 = vmatmul.mubr.f32.gmra.mrb[0].mxu0 %v341
        %v550 = vpop.f32.mrb[0].mxu0
        %v551 = vadd.f32 %v265, %v550
        %v552 = vpop.f32.mrb[0].mxu0
        %553 = vmatprep.mubr.f32.mxu0 0.0
        %554 = vmatmul.mubr.f32.gmra.mrb[0].mxu0 %v344
        %v555 = vpop.f32.mrb[0].mxu0
        %v556 = vadd.f32 %v265, %v555
        %v557 = vpop.f32.mrb[0].mxu0
        %558 = vmatprep.mubr.f32.mxu0 0.0
        %559 = vmatmul.mubr.f32.gmra.mrb[0].mxu0 %v347
        %v560 = vpop.f32.mrb[0].mxu0
        %v561 = vadd.f32 %v265, %v560
        %v562 = vpop.f32.mrb[0].mxu0
        %563 = vmatprep.mubr.f32.mxu0 0.0
        %564 = vmatmul.mubr.f32.gmra.mrb[0].mxu0 %v350
        %v565 = vpop.f32.mrb[0].mxu0
        %v566 = vadd.f32 %v265, %v565
        %v567 = vpop.f32.mrb[0].mxu0
        %568 = vmatprep.mubr.f32.mxu0 0.0
        %569 = vmatmul.mubr.f32.gmra.mrb[0].mxu0 %v353
        %v570 = vpop.f32.mrb[0].mxu0
        %v571 = vadd.f32 %v265, %v570
        %v572 = vpop.f32.mrb[0].mxu0
        %573 = vmatprep.mubr.f32.mxu0 0.0
        %574 = vmatmul.mubr.f32.gmra.mrb[0].mxu0 %v356
        %v575 = vpop.f32.mrb[0].mxu0
        %v576 = vadd.f32 %v265, %v575
        %v577 = vpop.f32.mrb[0].mxu0
        %578 = vmatprep.mubr.f32.mxu0 0.0
        %579 = vmatmul.mubr.f32.gmra.mrb[0].mxu0 %v359
        %v580 = vpop.f32.mrb[0].mxu0
        %v581 = vadd.f32 %v265, %v580
        %v582 = vpop.f32.mrb[0].mxu0
        %583 = vmatprep.mubr.f32.mxu0 0.0
        %584 = vmatmul.mubr.f32.gmra.mrb[0].mxu0 %v362
        %v585 = vpop.f32.mrb[0].mxu0
        %v586 = vadd.f32 %v265, %v585
        %v587 = vpop.f32.mrb[0].mxu0
        %588 = vdwg.mxu0
        %v589 = vmax.f32 %v431, 0.0
        %v590 = vmax.f32 %v436, 0.0
        %v591 = vmax.f32 %v441, 0.0
        %v592 = vmax.f32 %v446, 0.0
        %v593 = vmax.f32 %v451, 0.0
        %v594 = vmax.f32 %v456, 0.0
        %v595 = vmax.f32 %v461, 0.0
        %v596 = vmax.f32 %v466, 0.0
        %v597 = vmax.f32 %v471, 0.0
        %v598 = vmax.f32 %v476, 0.0
        %v599 = vmax.f32 %v481, 0.0
        %v600 = vmax.f32 %v486, 0.0
        %v601 = vmax.f32 %v491, 0.0
        %v602 = vmax.f32 %v496, 0.0
        %v603 = vmax.f32 %v501, 0.0
        %v604 = vmax.f32 %v506, 0.0
        %v605 = vmax.f32 %v511, 0.0
        %v606 = vmax.f32 %v516, 0.0
        %v607 = vmax.f32 %v521, 0.0
        %v608 = vmax.f32 %v526, 0.0
        %v609 = vmax.f32 %v531, 0.0
        %v610 = vmax.f32 %v536, 0.0
        %v611 = vmax.f32 %v541, 0.0
        %v612 = vmax.f32 %v546, 0.0
        %v613 = vmax.f32 %v551, 0.0
        %v614 = vmax.f32 %v556, 0.0
        %v615 = vmax.f32 %v561, 0.0
        %v616 = vmax.f32 %v566, 0.0
        %v617 = vmax.f32 %v571, 0.0
        %v618 = vmax.f32 %v576, 0.0
        %v619 = vmax.f32 %v581, 0.0
        %v620 = vmax.f32 %v586, 0.0
        %v621 = vld [vmem:[%s3] sm:$0xff]
        %v622 = vld [vmem:[%s3 + $0x8] sm:$0xff]
        %v623 = vld [vmem:[%s3 + $0x10] sm:$0xff]
        %v624 = vld [vmem:[%s3 + $0x18] sm:$0xff]
        %v625 = vld [vmem:[%s3 + $0x20] sm:$0xff]
        %v626 = vld [vmem:[%s3 + $0x28] sm:$0xff]
        %v627 = vld [vmem:[%s3 + $0x30] sm:$0xff]
        %v628 = vld [vmem:[%s3 + $0x38] sm:$0xff]
        %v629 = vld [vmem:[%s3 + $0x40] sm:$0xff]
        %v630 = vld [vmem:[%s3 + $0x48] sm:$0xff]
        %v631 = vld [vmem:[%s3 + $0x50] sm:$0xff]
        %v632 = vld [vmem:[%s3 + $0x58] sm:$0xff]
        %v633 = vld [vmem:[%s3 + $0x60] sm:$0xff]
        %v634 = vld [vmem:[%s3 + $0x68] sm:$0xff]
        %v635 = vld [vmem:[%s3 + $0x70] sm:$0xff]
        %v636 = vld [vmem:[%s3 + $0x78] sm:$0xff]
        %v637 = vld [vmem:[%s4] sm:$0x1]
        %v639 = vlaneseq
        %v640 = vshrl.u32 %v639, 7
        %v641 = vsub.s32 0, %v640
        %v642 = vrot.slane %v637, %v641
        %644 = vmatprep.subr.mxu0 0.0
        %645 = vmatpush1.msra.mxu0 %v621
        %646 = vmatprep.subr.mxu0 0.0
        %647 = vmatpush1.msra.mxu0 %v622
        %648 = vmatprep.subr.mxu0 0.0
        %649 = vmatpush1.msra.mxu0 %v623
        %650 = vmatprep.subr.mxu0 0.0
        %651 = vmatpush1.msra.mxu0 %v624
        %652 = vmatprep.subr.mxu0 0.0
        %653 = vmatpush1.msra.mxu0 %v625
        %654 = vmatprep.subr.mxu0 0.0
        %655 = vmatpush1.msra.mxu0 %v626
        %656 = vmatprep.subr.mxu0 0.0
        %657 = vmatpush1.msra.mxu0 %v627
        %658 = vmatprep.subr.mxu0 0.0
        %659 = vmatpush1.msra.mxu0 %v628
        %660 = vmatprep.subr.mxu0 0.0
        %661 = vmatpush1.msra.mxu0 %v629
        %662 = vmatprep.subr.mxu0 0.0
        %663 = vmatpush1.msra.mxu0 %v630
        %664 = vmatprep.subr.mxu0 0.0
        %665 = vmatpush1.msra.mxu0 %v631
        %666 = vmatprep.subr.mxu0 0.0
        %667 = vmatpush1.msra.mxu0 %v632
        %668 = vmatprep.subr.mxu0 0.0
        %669 = vmatpush1.msra.mxu0 %v633
        %670 = vmatprep.subr.mxu0 0.0
        %671 = vmatpush1.msra.mxu0 %v634
        %672 = vmatprep.subr.mxu0 0.0
        %673 = vmatpush1.msra.mxu0 %v635
        %674 = vmatprep.subr.mxu0 0.0
        %675 = vmatpush1.msra.mxu0 %v636
        %676 = vmatprep.subr.mxu0 0.0
        %677 = vmatpush1.msra.mxu0 0.0
        %678 = vmatprep.subr.mxu0 0.0
        %679 = vmatpush1.msra.mxu0 0.0
        %680 = vmatprep.subr.mxu0 0.0
        %681 = vmatpush1.msra.mxu0 0.0
        %682 = vmatprep.subr.mxu0 0.0
        %683 = vmatpush1.msra.mxu0 0.0
        %684 = vmatprep.subr.mxu0 0.0
        %685 = vmatpush1.msra.mxu0 0.0
        %686 = vmatprep.subr.mxu0 0.0
        %687 = vmatpush1.msra.mxu0 0.0
        %688 = vmatprep.subr.mxu0 0.0
        %689 = vmatpush1.msra.mxu0 0.0
        %690 = vmatprep.subr.mxu0 0.0
        %691 = vmatpush1.msra.mxu0 0.0
        %692 = vmatprep.subr.mxu0 0.0
        %693 = vmatpush1.msra.mxu0 0.0
        %694 = vmatprep.subr.mxu0 0.0
        %695 = vmatpush1.msra.mxu0 0.0
        %696 = vmatprep.subr.mxu0 0.0
        %697 = vmatpush1.msra.mxu0 0.0
        %698 = vmatprep.subr.mxu0 0.0
        %699 = vmatpush1.msra.mxu0 0.0
        %700 = vmatprep.subr.mxu0 0.0
        %701 = vmatpush1.msra.mxu0 0.0
        %702 = vmatprep.subr.mxu0 0.0
        %703 = vmatpush1.msra.mxu0 0.0
        %704 = vmatprep.subr.mxu0 0.0
        %705 = vmatpush1.msra.mxu0 0.0
        %706 = vmatprep.subr.mxu0 0.0
        %707 = vmatpush1.msra.mxu0 0.0
        %708 = vmatprep.mubr.f32.mxu0 0.0
        %709 = vmatmul.mubr.f32.gmra.mrb[0].mxu0 %v589
        %v710 = vpop.f32.mrb[0].mxu0
        %v711 = vadd.f32 %v642, %v710
        %v712 = vpop.f32.mrb[0].mxu0
        %713 = vmatprep.mubr.f32.mxu0 0.0
        %714 = vmatmul.mubr.f32.gmra.mrb[0].mxu0 %v590
        %v715 = vpop.f32.mrb[0].mxu0
        %v716 = vadd.f32 %v642, %v715
        %v717 = vpop.f32.mrb[0].mxu0
        %718 = vmatprep.mubr.f32.mxu0 0.0
        %719 = vmatmul.mubr.f32.gmra.mrb[0].mxu0 %v591
        %v720 = vpop.f32.mrb[0].mxu0
        %v721 = vadd.f32 %v642, %v720
        %v722 = vpop.f32.mrb[0].mxu0
        %723 = vmatprep.mubr.f32.mxu0 0.0
        %724 = vmatmul.mubr.f32.gmra.mrb[0].mxu0 %v592
        %v725 = vpop.f32.mrb[0].mxu0
        %v726 = vadd.f32 %v642, %v725
        %v727 = vpop.f32.mrb[0].mxu0
        %728 = vmatprep.mubr.f32.mxu0 0.0
        %729 = vmatmul.mubr.f32.gmra.mrb[0].mxu0 %v593
        %v730 = vpop.f32.mrb[0].mxu0
        %v731 = vadd.f32 %v642, %v730
        %v732 = vpop.f32.mrb[0].mxu0
        %733 = vmatprep.mubr.f32.mxu0 0.0
        %734 = vmatmul.mubr.f32.gmra.mrb[0].mxu0 %v594
        %v735 = vpop.f32.mrb[0].mxu0
        %v736 = vadd.f32 %v642, %v735
        %v737 = vpop.f32.mrb[0].mxu0
        %738 = vmatprep.mubr.f32.mxu0 0.0
        %739 = vmatmul.mubr.f32.gmra.mrb[0].mxu0 %v595
        %v740 = vpop.f32.mrb[0].mxu0
        %v741 = vadd.f32 %v642, %v740
        %v742 = vpop.f32.mrb[0].mxu0
        %743 = vmatprep.mubr.f32.mxu0 0.0
        %744 = vmatmul.mubr.f32.gmra.mrb[0].mxu0 %v596
        %v745 = vpop.f32.mrb[0].mxu0
        %v746 = vadd.f32 %v642, %v745
        %v747 = vpop.f32.mrb[0].mxu0
        %748 = vmatprep.mubr.f32.mxu0 0.0
        %749 = vmatmul.mubr.f32.gmra.mrb[0].mxu0 %v597
        %v750 = vpop.f32.mrb[0].mxu0
        %v751 = vadd.f32 %v642, %v750
        %v752 = vpop.f32.mrb[0].mxu0
        %753 = vmatprep.mubr.f32.mxu0 0.0
        %754 = vmatmul.mubr.f32.gmra.mrb[0].mxu0 %v598
        %v755 = vpop.f32.mrb[0].mxu0
        %v756 = vadd.f32 %v642, %v755
        %v757 = vpop.f32.mrb[0].mxu0
        %758 = vmatprep.mubr.f32.mxu0 0.0
        %759 = vmatmul.mubr.f32.gmra.mrb[0].mxu0 %v599
        %v760 = vpop.f32.mrb[0].mxu0
        %v761 = vadd.f32 %v642, %v760
        %v762 = vpop.f32.mrb[0].mxu0
        %763 = vmatprep.mubr.f32.mxu0 0.0
        %764 = vmatmul.mubr.f32.gmra.mrb[0].mxu0 %v600
        %v765 = vpop.f32.mrb[0].mxu0
        %v766 = vadd.f32 %v642, %v765
        %v767 = vpop.f32.mrb[0].mxu0
        %768 = vmatprep.mubr.f32.mxu0 0.0
        %769 = vmatmul.mubr.f32.gmra.mrb[0].mxu0 %v601
        %v770 = vpop.f32.mrb[0].mxu0
        %v771 = vadd.f32 %v642, %v770
        %v772 = vpop.f32.mrb[0].mxu0
        %773 = vmatprep.mubr.f32.mxu0 0.0
        %774 = vmatmul.mubr.f32.gmra.mrb[0].mxu0 %v602
        %v775 = vpop.f32.mrb[0].mxu0
        %v776 = vadd.f32 %v642, %v775
        %v777 = vpop.f32.mrb[0].mxu0
        %778 = vmatprep.mubr.f32.mxu0 0.0
        %779 = vmatmul.mubr.f32.gmra.mrb[0].mxu0 %v603
        %v780 = vpop.f32.mrb[0].mxu0
        %v781 = vadd.f32 %v642, %v780
        %v782 = vpop.f32.mrb[0].mxu0
        %783 = vmatprep.mubr.f32.mxu0 0.0
        %784 = vmatmul.mubr.f32.gmra.mrb[0].mxu0 %v604
        %v785 = vpop.f32.mrb[0].mxu0
        %v786 = vadd.f32 %v642, %v785
        %v787 = vpop.f32.mrb[0].mxu0
        %788 = vmatprep.mubr.f32.mxu0 0.0
        %789 = vmatmul.mubr.f32.gmra.mrb[0].mxu0 %v605
        %v790 = vpop.f32.mrb[0].mxu0
        %v791 = vadd.f32 %v642, %v790
        %v792 = vpop.f32.mrb[0].mxu0
        %793 = vmatprep.mubr.f32.mxu0 0.0
        %794 = vmatmul.mubr.f32.gmra.mrb[0].mxu0 %v606
        %v795 = vpop.f32.mrb[0].mxu0
        %v796 = vadd.f32 %v642, %v795
        %v797 = vpop.f32.mrb[0].mxu0
        %798 = vmatprep.mubr.f32.mxu0 0.0
        %799 = vmatmul.mubr.f32.gmra.mrb[0].mxu0 %v607
        %v800 = vpop.f32.mrb[0].mxu0
        %v801 = vadd.f32 %v642, %v800
        %v802 = vpop.f32.mrb[0].mxu0
        %803 = vmatprep.mubr.f32.mxu0 0.0
        %804 = vmatmul.mubr.f32.gmra.mrb[0].mxu0 %v608
        %v805 = vpop.f32.mrb[0].mxu0
        %v806 = vadd.f32 %v642, %v805
        %v807 = vpop.f32.mrb[0].mxu0
        %808 = vmatprep.mubr.f32.mxu0 0.0
        %809 = vmatmul.mubr.f32.gmra.mrb[0].mxu0 %v609
        %v810 = vpop.f32.mrb[0].mxu0
        %v811 = vadd.f32 %v642, %v810
        %v812 = vpop.f32.mrb[0].mxu0
        %813 = vmatprep.mubr.f32.mxu0 0.0
        %814 = vmatmul.mubr.f32.gmra.mrb[0].mxu0 %v610
        %v815 = vpop.f32.mrb[0].mxu0
        %v816 = vadd.f32 %v642, %v815
        %v817 = vpop.f32.mrb[0].mxu0
        %818 = vmatprep.mubr.f32.mxu0 0.0
        %819 = vmatmul.mubr.f32.gmra.mrb[0].mxu0 %v611
        %v820 = vpop.f32.mrb[0].mxu0
        %v821 = vadd.f32 %v642, %v820
        %v822 = vpop.f32.mrb[0].mxu0
        %823 = vmatprep.mubr.f32.mxu0 0.0
        %824 = vmatmul.mubr.f32.gmra.mrb[0].mxu0 %v612
        %v825 = vpop.f32.mrb[0].mxu0
        %v826 = vadd.f32 %v642, %v825
        %v827 = vpop.f32.mrb[0].mxu0
        %828 = vmatprep.mubr.f32.mxu0 0.0
        %829 = vmatmul.mubr.f32.gmra.mrb[0].mxu0 %v613
        %v830 = vpop.f32.mrb[0].mxu0
        %v831 = vadd.f32 %v642, %v830
        %v832 = vpop.f32.mrb[0].mxu0
        %833 = vmatprep.mubr.f32.mxu0 0.0
        %834 = vmatmul.mubr.f32.gmra.mrb[0].mxu0 %v614
        %v835 = vpop.f32.mrb[0].mxu0
        %v836 = vadd.f32 %v642, %v835
        %v837 = vpop.f32.mrb[0].mxu0
        %838 = vmatprep.mubr.f32.mxu0 0.0
        %839 = vmatmul.mubr.f32.gmra.mrb[0].mxu0 %v615
        %v840 = vpop.f32.mrb[0].mxu0
        %v841 = vadd.f32 %v642, %v840
        %v842 = vpop.f32.mrb[0].mxu0
        %843 = vmatprep.mubr.f32.mxu0 0.0
        %844 = vmatmul.mubr.f32.gmra.mrb[0].mxu0 %v616
        %v845 = vpop.f32.mrb[0].mxu0
        %v846 = vadd.f32 %v642, %v845
        %v847 = vpop.f32.mrb[0].mxu0
        %848 = vmatprep.mubr.f32.mxu0 0.0
        %849 = vmatmul.mubr.f32.gmra.mrb[0].mxu0 %v617
        %v850 = vpop.f32.mrb[0].mxu0
        %v851 = vadd.f32 %v642, %v850
        %v852 = vpop.f32.mrb[0].mxu0
        %853 = vmatprep.mubr.f32.mxu0 0.0
        %854 = vmatmul.mubr.f32.gmra.mrb[0].mxu0 %v618
        %v855 = vpop.f32.mrb[0].mxu0
        %v856 = vadd.f32 %v642, %v855
        %v857 = vpop.f32.mrb[0].mxu0
        %858 = vmatprep.mubr.f32.mxu0 0.0
        %859 = vmatmul.mubr.f32.gmra.mrb[0].mxu0 %v619
        %v860 = vpop.f32.mrb[0].mxu0
        %v861 = vadd.f32 %v642, %v860
        %v862 = vpop.f32.mrb[0].mxu0
        %863 = vmatprep.mubr.f32.mxu0 0.0
        %864 = vmatmul.mubr.f32.gmra.mrb[0].mxu0 %v620
        %v865 = vpop.f32.mrb[0].mxu0
        %v866 = vadd.f32 %v642, %v865
        %v867 = vpop.f32.mrb[0].mxu0
        %868 = vdwg.mxu0
        %869 = vmax.xlane.f32.xlu0 %v711
        %v870 = vpop.xlane.xlu0 %869
        %871 = vmax.xlane.f32.xlu0 %v716
        %v872 = vpop.xlane.xlu0 %871
        %873 = vmax.xlane.f32.xlu0 %v721
        %v874 = vpop.xlane.xlu0 %873
        %875 = vmax.xlane.f32.xlu0 %v726
        %v876 = vpop.xlane.xlu0 %875
        %877 = vmax.xlane.f32.xlu0 %v731
        %v878 = vpop.xlane.xlu0 %877
        %879 = vmax.xlane.f32.xlu0 %v736
        %v880 = vpop.xlane.xlu0 %879
        %881 = vmax.xlane.f32.xlu0 %v741
        %v882 = vpop.xlane.xlu0 %881
        %883 = vmax.xlane.f32.xlu0 %v746
        %v884 = vpop.xlane.xlu0 %883
        %885 = vmax.xlane.f32.xlu0 %v751
        %v886 = vpop.xlane.xlu0 %885
        %887 = vmax.xlane.f32.xlu0 %v756
        %v888 = vpop.xlane.xlu0 %887
        %889 = vmax.xlane.f32.xlu0 %v761
        %v890 = vpop.xlane.xlu0 %889
        %891 = vmax.xlane.f32.xlu0 %v766
        %v892 = vpop.xlane.xlu0 %891
        %893 = vmax.xlane.f32.xlu0 %v771
        %v894 = vpop.xlane.xlu0 %893
        %895 = vmax.xlane.f32.xlu0 %v776
        %v896 = vpop.xlane.xlu0 %895
        %897 = vmax.xlane.f32.xlu0 %v781
        %v898 = vpop.xlane.xlu0 %897
        %899 = vmax.xlane.f32.xlu0 %v786
        %v900 = vpop.xlane.xlu0 %899
        %901 = vmax.xlane.f32.xlu0 %v791
        %v902 = vpop.xlane.xlu0 %901
        %903 = vmax.xlane.f32.xlu0 %v796
        %v904 = vpop.xlane.xlu0 %903
        %905 = vmax.xlane.f32.xlu0 %v801
        %v906 = vpop.xlane.xlu0 %905
        %907 = vmax.xlane.f32.xlu0 %v806
        %v908 = vpop.xlane.xlu0 %907
        %909 = vmax.xlane.f32.xlu0 %v811
        %v910 = vpop.xlane.xlu0 %909
        %911 = vmax.xlane.f32.xlu0 %v816
        %v912 = vpop.xlane.xlu0 %911
        %913 = vmax.xlane.f32.xlu0 %v821
        %v914 = vpop.xlane.xlu0 %913
        %915 = vmax.xlane.f32.xlu0 %v826
        %v916 = vpop.xlane.xlu0 %915
        %917 = vmax.xlane.f32.xlu0 %v831
        %v918 = vpop.xlane.xlu0 %917
        %919 = vmax.xlane.f32.xlu0 %v836
        %v920 = vpop.xlane.xlu0 %919
        %921 = vmax.xlane.f32.xlu0 %v841
        %v922 = vpop.xlane.xlu0 %921
        %923 = vmax.xlane.f32.xlu0 %v846
        %v924 = vpop.xlane.xlu0 %923
        %925 = vmax.xlane.f32.xlu0 %v851
        %v926 = vpop.xlane.xlu0 %925
        %927 = vmax.xlane.f32.xlu0 %v856
        %v928 = vpop.xlane.xlu0 %927
        %929 = vmax.xlane.f32.xlu0 %v861
        %v930 = vpop.xlane.xlu0 %929
        %931 = vmax.xlane.f32.xlu0 %v866
        %v932 = vpop.xlane.xlu0 %931
        %v933 = vsub.f32 %v711, %v870
        %v934 = vsub.f32 %v716, %v872
        %v935 = vsub.f32 %v721, %v874
        %v936 = vsub.f32 %v726, %v876
        %v937 = vsub.f32 %v731, %v878
        %v938 = vsub.f32 %v736, %v880
        %v939 = vsub.f32 %v741, %v882
        %v940 = vsub.f32 %v746, %v884
        %v941 = vsub.f32 %v751, %v886
        %v942 = vsub.f32 %v756, %v888
        %v943 = vsub.f32 %v761, %v890
        %v944 = vsub.f32 %v766, %v892
        %v945 = vsub.f32 %v771, %v894
        %v946 = vsub.f32 %v776, %v896
        %v947 = vsub.f32 %v781, %v898
        %v948 = vsub.f32 %v786, %v900
        %v949 = vsub.f32 %v791, %v902
        %v950 = vsub.f32 %v796, %v904
        %v951 = vsub.f32 %v801, %v906
        %v952 = vsub.f32 %v806, %v908
        %v953 = vsub.f32 %v811, %v910
        %v954 = vsub.f32 %v816, %v912
        %v955 = vsub.f32 %v821, %v914
        %v956 = vsub.f32 %v826, %v916
        %v957 = vsub.f32 %v831, %v918
        %v958 = vsub.f32 %v836, %v920
        %v959 = vsub.f32 %v841, %v922
        %v960 = vsub.f32 %v846, %v924
        %v961 = vsub.f32 %v851, %v926
        %v962 = vsub.f32 %v856, %v928
        %v963 = vsub.f32 %v861, %v930
        %v964 = vsub.f32 %v866, %v932
        %v965 = vmul.f32 %v933, 1.442695
        %v966 = vpow.pop %v965
        %v967 = vmul.f32 %v934, 1.442695
        %v968 = vpow.pop %v967
        %v969 = vmul.f32 %v935, 1.442695
        %v970 = vpow.pop %v969
        %v971 = vmul.f32 %v936, 1.442695
        %v972 = vpow.pop %v971
        %v973 = vmul.f32 %v937, 1.442695
        %v974 = vpow.pop %v973
        %v975 = vmul.f32 %v938, 1.442695
        %v976 = vpow.pop %v975
        %v977 = vmul.f32 %v939, 1.442695
        %v978 = vpow.pop %v977
        %v979 = vmul.f32 %v940, 1.442695
        %v980 = vpow.pop %v979
        %v981 = vmul.f32 %v941, 1.442695
        %v982 = vpow.pop %v981
        %v983 = vmul.f32 %v942, 1.442695
        %v984 = vpow.pop %v983
        %v985 = vmul.f32 %v943, 1.442695
        %v986 = vpow.pop %v985
        %v987 = vmul.f32 %v944, 1.442695
        %v988 = vpow.pop %v987
        %v989 = vmul.f32 %v945, 1.442695
        %v990 = vpow.pop %v989
        %v991 = vmul.f32 %v946, 1.442695
        %v992 = vpow.pop %v991
        %v993 = vmul.f32 %v947, 1.442695
        %v994 = vpow.pop %v993
        %v995 = vmul.f32 %v948, 1.442695
        %v996 = vpow.pop %v995
        %v997 = vmul.f32 %v949, 1.442695
        %v998 = vpow.pop %v997
        %v999 = vmul.f32 %v950, 1.442695
        %v1000 = vpow.pop %v999
        %v1001 = vmul.f32 %v951, 1.442695
        %v1002 = vpow.pop %v1001
        %v1003 = vmul.f32 %v952, 1.442695
        %v1004 = vpow.pop %v1003
        %v1005 = vmul.f32 %v953, 1.442695
        %v1006 = vpow.pop %v1005
        %v1007 = vmul.f32 %v954, 1.442695
        %v1008 = vpow.pop %v1007
        %v1009 = vmul.f32 %v955, 1.442695
        %v1010 = vpow.pop %v1009
        %v1011 = vmul.f32 %v956, 1.442695
        %v1012 = vpow.pop %v1011
        %v1013 = vmul.f32 %v957, 1.442695
        %v1014 = vpow.pop %v1013
        %v1015 = vmul.f32 %v958, 1.442695
        %v1016 = vpow.pop %v1015
        %v1017 = vmul.f32 %v959, 1.442695
        %v1018 = vpow.pop %v1017
        %v1019 = vmul.f32 %v960, 1.442695
        %v1020 = vpow.pop %v1019
        %v1021 = vmul.f32 %v961, 1.442695
        %v1022 = vpow.pop %v1021
        %v1023 = vmul.f32 %v962, 1.442695
        %v1024 = vpow.pop %v1023
        %v1025 = vmul.f32 %v963, 1.442695
        %v1026 = vpow.pop %v1025
        %v1027 = vmul.f32 %v964, 1.442695
        %v1028 = vpow.pop %v1027
        %1029 = vadd.xlane.f32.xlu0 %v966
        %v1030 = vpop.xlane.xlu0 %1029
        %1031 = vadd.xlane.f32.xlu0 %v968
        %v1032 = vpop.xlane.xlu0 %1031
        %1033 = vadd.xlane.f32.xlu0 %v970
        %v1034 = vpop.xlane.xlu0 %1033
        %1035 = vadd.xlane.f32.xlu0 %v972
        %v1036 = vpop.xlane.xlu0 %1035
        %1037 = vadd.xlane.f32.xlu0 %v974
        %v1038 = vpop.xlane.xlu0 %1037
        %1039 = vadd.xlane.f32.xlu0 %v976
        %v1040 = vpop.xlane.xlu0 %1039
        %1041 = vadd.xlane.f32.xlu0 %v978
        %v1042 = vpop.xlane.xlu0 %1041
        %1043 = vadd.xlane.f32.xlu0 %v980
        %v1044 = vpop.xlane.xlu0 %1043
        %1045 = vadd.xlane.f32.xlu0 %v982
        %v1046 = vpop.xlane.xlu0 %1045
        %1047 = vadd.xlane.f32.xlu0 %v984
        %v1048 = vpop.xlane.xlu0 %1047
        %1049 = vadd.xlane.f32.xlu0 %v986
        %v1050 = vpop.xlane.xlu0 %1049
        %1051 = vadd.xlane.f32.xlu0 %v988
        %v1052 = vpop.xlane.xlu0 %1051
        %1053 = vadd.xlane.f32.xlu0 %v990
        %v1054 = vpop.xlane.xlu0 %1053
        %1055 = vadd.xlane.f32.xlu0 %v992
        %v1056 = vpop.xlane.xlu0 %1055
        %1057 = vadd.xlane.f32.xlu0 %v994
        %v1058 = vpop.xlane.xlu0 %1057
        %1059 = vadd.xlane.f32.xlu0 %v996
        %v1060 = vpop.xlane.xlu0 %1059
        %1061 = vadd.xlane.f32.xlu0 %v998
        %v1062 = vpop.xlane.xlu0 %1061
        %1063 = vadd.xlane.f32.xlu0 %v1000
        %v1064 = vpop.xlane.xlu0 %1063
        %1065 = vadd.xlane.f32.xlu0 %v1002
        %v1066 = vpop.xlane.xlu0 %1065
        %1067 = vadd.xlane.f32.xlu0 %v1004
        %v1068 = vpop.xlane.xlu0 %1067
        %1069 = vadd.xlane.f32.xlu0 %v1006
        %v1070 = vpop.xlane.xlu0 %1069
        %1071 = vadd.xlane.f32.xlu0 %v1008
        %v1072 = vpop.xlane.xlu0 %1071
        %1073 = vadd.xlane.f32.xlu0 %v1010
        %v1074 = vpop.xlane.xlu0 %1073
        %1075 = vadd.xlane.f32.xlu0 %v1012
        %v1076 = vpop.xlane.xlu0 %1075
        %1077 = vadd.xlane.f32.xlu0 %v1014
        %v1078 = vpop.xlane.xlu0 %1077
        %1079 = vadd.xlane.f32.xlu0 %v1016
        %v1080 = vpop.xlane.xlu0 %1079
        %1081 = vadd.xlane.f32.xlu0 %v1018
        %v1082 = vpop.xlane.xlu0 %1081
        %1083 = vadd.xlane.f32.xlu0 %v1020
        %v1084 = vpop.xlane.xlu0 %1083
        %1085 = vadd.xlane.f32.xlu0 %v1022
        %v1086 = vpop.xlane.xlu0 %1085
        %1087 = vadd.xlane.f32.xlu0 %v1024
        %v1088 = vpop.xlane.xlu0 %1087
        %1089 = vadd.xlane.f32.xlu0 %v1026
        %v1090 = vpop.xlane.xlu0 %1089
        %1091 = vadd.xlane.f32.xlu0 %v1028
        %v1092 = vpop.xlane.xlu0 %1091
        %v1093 = vlog2.pop %v1030
        %v1094 = vmul.f32 %v1093, 0.6931472
        %v1095 = vlog2.pop %v1032
        %v1096 = vmul.f32 %v1095, 0.6931472
        %v1097 = vlog2.pop %v1034
        %v1098 = vmul.f32 %v1097, 0.6931472
        %v1099 = vlog2.pop %v1036
        %v1100 = vmul.f32 %v1099, 0.6931472
        %v1101 = vlog2.pop %v1038
        %v1102 = vmul.f32 %v1101, 0.6931472
        %v1103 = vlog2.pop %v1040
        %v1104 = vmul.f32 %v1103, 0.6931472
        %v1105 = vlog2.pop %v1042
        %v1106 = vmul.f32 %v1105, 0.6931472
        %v1107 = vlog2.pop %v1044
        %v1108 = vmul.f32 %v1107, 0.6931472
        %v1109 = vlog2.pop %v1046
        %v1110 = vmul.f32 %v1109, 0.6931472
        %v1111 = vlog2.pop %v1048
        %v1112 = vmul.f32 %v1111, 0.6931472
        %v1113 = vlog2.pop %v1050
        %v1114 = vmul.f32 %v1113, 0.6931472
        %v1115 = vlog2.pop %v1052
        %v1116 = vmul.f32 %v1115, 0.6931472
        %v1117 = vlog2.pop %v1054
        %v1118 = vmul.f32 %v1117, 0.6931472
        %v1119 = vlog2.pop %v1056
        %v1120 = vmul.f32 %v1119, 0.6931472
        %v1121 = vlog2.pop %v1058
        %v1122 = vmul.f32 %v1121, 0.6931472
        %v1123 = vlog2.pop %v1060
        %v1124 = vmul.f32 %v1123, 0.6931472
        %v1125 = vlog2.pop %v1062
        %v1126 = vmul.f32 %v1125, 0.6931472
        %v1127 = vlog2.pop %v1064
        %v1128 = vmul.f32 %v1127, 0.6931472
        %v1129 = vlog2.pop %v1066
        %v1130 = vmul.f32 %v1129, 0.6931472
        %v1131 = vlog2.pop %v1068
        %v1132 = vmul.f32 %v1131, 0.6931472
        %v1133 = vlog2.pop %v1070
        %v1134 = vmul.f32 %v1133, 0.6931472
        %v1135 = vlog2.pop %v1072
        %v1136 = vmul.f32 %v1135, 0.6931472
        %v1137 = vlog2.pop %v1074
        %v1138 = vmul.f32 %v1137, 0.6931472
        %v1139 = vlog2.pop %v1076
        %v1140 = vmul.f32 %v1139, 0.6931472
        %v1141 = vlog2.pop %v1078
        %v1142 = vmul.f32 %v1141, 0.6931472
        %v1143 = vlog2.pop %v1080
        %v1144 = vmul.f32 %v1143, 0.6931472
        %v1145 = vlog2.pop %v1082
        %v1146 = vmul.f32 %v1145, 0.6931472
        %v1147 = vlog2.pop %v1084
        %v1148 = vmul.f32 %v1147, 0.6931472
        %v1149 = vlog2.pop %v1086
        %v1150 = vmul.f32 %v1149, 0.6931472
        %v1151 = vlog2.pop %v1088
        %v1152 = vmul.f32 %v1151, 0.6931472
        %v1153 = vlog2.pop %v1090
        %v1154 = vmul.f32 %v1153, 0.6931472
        %v1155 = vlog2.pop %v1092
        %v1156 = vmul.f32 %v1155, 0.6931472
        %v1157 = vsub.f32 %v933, %v1094
        %v1158 = vsub.f32 %v934, %v1096
        %v1159 = vsub.f32 %v935, %v1098
        %v1160 = vsub.f32 %v936, %v1100
        %v1161 = vsub.f32 %v937, %v1102
        %v1162 = vsub.f32 %v938, %v1104
        %v1163 = vsub.f32 %v939, %v1106
        %v1164 = vsub.f32 %v940, %v1108
        %v1165 = vsub.f32 %v941, %v1110
        %v1166 = vsub.f32 %v942, %v1112
        %v1167 = vsub.f32 %v943, %v1114
        %v1168 = vsub.f32 %v944, %v1116
        %v1169 = vsub.f32 %v945, %v1118
        %v1170 = vsub.f32 %v946, %v1120
        %v1171 = vsub.f32 %v947, %v1122
        %v1172 = vsub.f32 %v948, %v1124
        %v1173 = vsub.f32 %v949, %v1126
        %v1174 = vsub.f32 %v950, %v1128
        %v1175 = vsub.f32 %v951, %v1130
        %v1176 = vsub.f32 %v952, %v1132
        %v1177 = vsub.f32 %v953, %v1134
        %v1178 = vsub.f32 %v954, %v1136
        %v1179 = vsub.f32 %v955, %v1138
        %v1180 = vsub.f32 %v956, %v1140
        %v1181 = vsub.f32 %v957, %v1142
        %v1182 = vsub.f32 %v958, %v1144
        %v1183 = vsub.f32 %v959, %v1146
        %v1184 = vsub.f32 %v960, %v1148
        %v1185 = vsub.f32 %v961, %v1150
        %v1186 = vsub.f32 %v962, %v1152
        %v1187 = vsub.f32 %v963, %v1154
        %v1188 = vsub.f32 %v964, %v1156
        %1189 = vst [vmem:[%s218] sm:$0xff] %v1157
        %1190 = vst [vmem:[%s218 + $0x8] sm:$0xff] %v1158
        %1191 = vst [vmem:[%s218 + $0x10] sm:$0xff] %v1159
        %1192 = vst [vmem:[%s218 + $0x18] sm:$0xff] %v1160
        %1193 = vst [vmem:[%s218 + $0x20] sm:$0xff] %v1161
        %1194 = vst [vmem:[%s218 + $0x28] sm:$0xff] %v1162
        %1195 = vst [vmem:[%s218 + $0x30] sm:$0xff] %v1163
        %1196 = vst [vmem:[%s218 + $0x38] sm:$0xff] %v1164
        %1197 = vst [vmem:[%s218 + $0x40] sm:$0xff] %v1165
        %1198 = vst [vmem:[%s218 + $0x48] sm:$0xff] %v1166
        %1199 = vst [vmem:[%s218 + $0x50] sm:$0xff] %v1167
        %1200 = vst [vmem:[%s218 + $0x58] sm:$0xff] %v1168
        %1201 = vst [vmem:[%s218 + $0x60] sm:$0xff] %v1169
        %1202 = vst [vmem:[%s218 + $0x68] sm:$0xff] %v1170
        %1203 = vst [vmem:[%s218 + $0x70] sm:$0xff] %v1171
        %1204 = vst [vmem:[%s218 + $0x78] sm:$0xff] %v1172
        %1205 = vst [vmem:[%s218 + $0x80] sm:$0xff] %v1173
        %1206 = vst [vmem:[%s218 + $0x88] sm:$0xff] %v1174
        %1207 = vst [vmem:[%s218 + $0x90] sm:$0xff] %v1175
        %1208 = vst [vmem:[%s218 + $0x98] sm:$0xff] %v1176
        %1209 = vst [vmem:[%s218 + $0xa0] sm:$0xff] %v1177
        %1210 = vst [vmem:[%s218 + $0xa8] sm:$0xff] %v1178
        %1211 = vst [vmem:[%s218 + $0xb0] sm:$0xff] %v1179
        %1212 = vst [vmem:[%s218 + $0xb8] sm:$0xff] %v1180
        %1213 = vst [vmem:[%s218 + $0xc0] sm:$0xff] %v1181
        %1214 = vst [vmem:[%s218 + $0xc8] sm:$0xff] %v1182
        %1215 = vst [vmem:[%s218 + $0xd0] sm:$0xff] %v1183
        %1216 = vst [vmem:[%s218 + $0xd8] sm:$0xff] %v1184
        %1217 = vst [vmem:[%s218 + $0xe0] sm:$0xff] %v1185
        %1218 = vst [vmem:[%s218 + $0xe8] sm:$0xff] %v1186
        %1219 = vst [vmem:[%s218 + $0xf0] sm:$0xff] %v1187
        %1220 = vst [vmem:[%s218 + $0xf8] sm:$0xff] %v1188
        %s1221 = sand.u32 %s137, 1
        %s1222 = scalar_lea.sflag [#allocation3], %s1221
        %s1223 = sand.u32 %s137, 1
        %s1224 = smul.addr %s1223, 256
        %s1225 = scalar_lea.vmem [#allocation2], %s1224
        // Predicated region
        $region41: #{tpu_custom_call.1} parent=39 // pred_check
          %p1226 = pneg %p147
        $region42: #{tpu_custom_call.1} parent=39 // pred_check_branch
          %1228 = sbr.rel (%p1226) target = $region44
        $region43: #{tpu_custom_call.1} parent=39 // pred_region
          %s1229 = smul.u32 32, %s19
          %s1231 = ssub.s32 4096, 4096
          %1232 = vsyncadd %s1222, %s1231
          %s1233 = smul.addr %s1229, 128
          %s1234 = scalar_lea.hbm %s5, %s1233
          %s1235 = sshll.u32 %s1225, 4
          %s1236 = int_to_ptr.vmem [resolvable:$true] %s1235
          %1241 = dma.vmem_to_hbm [thread:$0]  %s1236, 4096, %s1234, %s1222, 128, 128, 8
        $region44: #{tpu_custom_call.1} parent=39 // pred_fallthru
          _
      $region40: #{tpu_custom_call.1} parent=5 // pred_fallthru
        _
      %p1242 = scmp.le.s32.totalorder 2, %s14
      // Predicated region
      $region45: #{tpu_custom_call.1} parent=5 // pred_check
        %p1243 = pneg %p1242
      $region46: #{tpu_custom_call.1} parent=5 // pred_check_branch
        %1245 = sbr.rel (%p1243) target = $region48
      $region47: #{tpu_custom_call.1} parent=5 // pred_region
        %s1246 = ssub.s32 %s14, 2
        // Predicated region
        $region49: #{tpu_custom_call.1} parent=47 // pred_check
          %p1247 = pneg %p153
        $region50: #{tpu_custom_call.1} parent=47 // pred_check_branch
          %1249 = sbr.rel (%p1247) target = $region52
        $region51: #{tpu_custom_call.1} parent=47 // pred_region
          %s1250 = sand.u32 %s138, 1
          %s1251 = scalar_lea.sflag [#allocation3], %s1250
          %s1252 = sand.u32 %s138, 1
          %s1253 = smul.addr %s1252, 256
          %s1254 = scalar_lea.vmem [#allocation2], %s1253
          %1255 = dma.done %s1251, 4096
        $region52: #{tpu_custom_call.1} parent=47 // pred_fallthru
          _
      $region48: #{tpu_custom_call.1} parent=5 // pred_fallthru
        _
    $region6: #{tpu_custom_call.1} parent=1 // loop_footer
      %s18 = sadd.s32 1, %s14
    $region7: #{tpu_custom_call.1} parent=1 // loop_footer_branch
      %13 = sbr.rel target = $region3
    $region8: #{tpu_custom_call.1} parent=1 // loop_exit
      _
    %1256 = vsyncpa [#allocation3], 1
    %s1257 = scalar_lea.sflag [#allocation3], 1
    %1258 = vsyncpa %s1257, 1

</llo_original>
